<compile_context>
chip_gen: v6e
topology: v6e:2x2x1
jax: 0.10.0
libtpu: 0.0.40
codegen_flags: <defaults>
</compile_context>

<pallas_src>
import functools

import jax
import jax.numpy as jnp
from jax.experimental import pallas as pl
from jax.experimental.pallas import tpu as pltpu


def _round_up(a, b):
    return -(-a // b) * b


def _selfce_kernel(x_ref, t_ref, o_ref, acc_ref, *, C, P, tprow, needs_mask):
    # x_ref : (1, C, TProw, 128) logits tile (pixels dense on sublanes+lanes)
    # t_ref : (1, TProw, 128)    int32 target class per pixel
    # o_ref : (1, 1, 1)          f32 per-sample mean CE (written on last tile)
    # acc_ref: VMEM (8, 128) f32 lane/sublane-resident running NLL partial sums
    p = pl.program_id(1)

    @pl.when(p == 0)
    def _():
        acc_ref[...] = jnp.zeros_like(acc_ref)

    t = t_ref[0]                                            # (TProw, 128) int32

    # Pass 1: running max over classes (unrolled; per-class slabs loaded from
    # VMEM so only a few (TProw, 128) values are live at a time).
    m = x_ref[0, 0].astype(jnp.float32)
    for c in range(1, C):
        m = jnp.maximum(m, x_ref[0, c].astype(jnp.float32))

    # Pass 2: fused exp-sum + target-logit gather via one-hot select.
    s = jnp.zeros((tprow, 128), jnp.float32)
    gathered = jnp.zeros((tprow, 128), jnp.float32)
    for c in range(C):
        xc = x_ref[0, c].astype(jnp.float32)
        s = s + jnp.exp(xc - m)
        gathered = jnp.where(t == c, xc, gathered)

    nll = (jnp.log(s) + m) - gathered                       # (TProw, 128)

    if needs_mask:
        # Zero out pixels past the true H*W (wrapper zero-padded up to the
        # tile grid); mean below still divides by the true P.
        row = jax.lax.broadcasted_iota(jnp.int32, (tprow, 128), 0)
        lane = jax.lax.broadcasted_iota(jnp.int32, (tprow, 128), 1)
        pix = (p * tprow + row) * 128 + lane
        nll = jnp.where(pix < P, nll, 0.0)

    # Per-tile reduction = pure VPU vreg adds into the (8,128) accumulator;
    # the single cross-lane/sublane reduce is paid once per sample below.
    acc_ref[...] += nll.reshape(tprow // 8, 8, 128).sum(axis=0)

    @pl.when(p == pl.num_programs(1) - 1)
    def _():
        total = jnp.sum(acc_ref[...], keepdims=True)        # (1, 1)
        o_ref[...] = (total * jnp.float32(1.0 / P)).reshape(1, 1, 1)


def _choose_row_tile(rows, C, itemsize, budget_bytes):
    """Rows (of 128 pixels each) per tile: VMEM-budget driven, multiple of 8."""
    # Double-buffered logits + targets bytes per 128-pixel row.
    per_row = 2 * (C * itemsize + 4) * 128
    max_rows = max(8, int(budget_bytes) // per_row)
    max_rows = (max_rows // 8) * 8
    return max(8, min(_round_up(rows, 8), max_rows))


def self_ce_loss(inputs, targets, *, vmem_budget_bytes=16 * 1024 * 1024):
    """inputs: (N, C, H, W) float (f32 or bf16); targets: (N, H, W) int.

    Returns (N,) float32: per-sample mean cross-entropy over all H*W pixels.
    """
    N, C, H, W = inputs.shape
    P = H * W
    itemsize = jnp.dtype(inputs.dtype).itemsize

    rows_raw = -(-P // 128)                       # 128-pixel rows needed
    tprow = _choose_row_tile(rows_raw, C, itemsize, vmem_budget_bytes)
    n_tiles = -(-rows_raw // tprow)
    rows = n_tiles * tprow
    p_pad = rows * 128
    needs_mask = (p_pad != P)

    # Free reshapes; padding only when P does not fill the tile grid.
    x = inputs.reshape(N, C, P)
    t = targets.astype(jnp.int32).reshape(N, P)
    if needs_mask:
        x = jnp.pad(x, ((0, 0), (0, 0), (0, p_pad - P)))
        t = jnp.pad(t, ((0, 0), (0, p_pad - P)))
    x = x.reshape(N, C, rows, 128)
    t = t.reshape(N, rows, 128)

    kernel = functools.partial(
        _selfce_kernel, C=C, P=P, tprow=tprow, needs_mask=needs_mask)

    out = pl.pallas_call(
        kernel,
        out_shape=jax.ShapeDtypeStruct((N, 1, 1), jnp.float32),
        grid_spec=pltpu.PrefetchScalarGridSpec(
            num_scalar_prefetch=0,
            grid=(N, n_tiles),
            in_specs=[
                pl.BlockSpec((1, C, tprow, 128), lambda i, p: (i, 0, p, 0)),
                pl.BlockSpec((1, tprow, 128), lambda i, p: (i, p, 0)),
            ],
            out_specs=pl.BlockSpec((1, 1, 1), lambda i, p: (i, 0, 0)),
            scratch_shapes=[pltpu.VMEM((8, 128), jnp.float32)],
        ),
        compiler_params=pltpu.CompilerParams(
            # Batch axis parallel (megacore sharding); pixel-reduction axis
            # carries the accumulator so it must be arbitrary.
            dimension_semantics=("parallel", "arbitrary"),
            # Pipeline budget (16 MiB default) + elementwise intermediates fit
            # comfortably under 48 MiB on v5e/v6e (128 MiB) and v7x (64 MiB).
            vmem_limit_bytes=48 * 1024 * 1024,
        ),
    )(x, t)
    # TODO(synk): ignore_index=-100 (PyTorch default) is not modeled; targets
    # must lie in [0, C).
    return out.reshape(N)


def _reference(inputs, targets):
    logp = jax.nn.log_softmax(inputs.astype(jnp.float32), axis=1)           # (N,C,H,W)
    nll = -jnp.take_along_axis(logp, targets[:, None, :, :], axis=1)[:, 0]  # (N,H,W)
    return nll.mean(axis=(1, 2))


if __name__ == "__main__":
    key = jax.random.PRNGKey(0)
    k1, k2, k3, k4, k5, k6 = jax.random.split(key, 6)

    # Small shape consistent with the module (N, C, H, W) + (N, H, W) targets.
    N, C, H, W = 2, 4, 16, 16
    inputs = jax.random.normal(k1, (N, C, H, W), dtype=jnp.float32)
    targets = jax.random.randint(k2, (N, H, W), 0, C, dtype=jnp.int32)

    out = jax.block_until_ready(self_ce_loss(inputs, targets))
    ref = _reference(inputs, targets)
    assert out.shape == (N,)
    assert jnp.allclose(out, ref, atol=1e-5, rtol=1e-5), (out, ref)

    # Multi-tile path: tiny VMEM budget forces several pixel tiles per sample
    # (exercises the cross-tile (8,128) accumulator and pixel masking).
    N2, C2, H2, W2 = 2, 3, 48, 48
    x2 = jax.random.normal(k3, (N2, C2, H2, W2), dtype=jnp.float32)
    t2 = jax.random.randint(k4, (N2, H2, W2), 0, C2, dtype=jnp.int32)
    out2 = jax.block_until_ready(
        self_ce_loss(x2, t2, vmem_budget_bytes=32 * 1024))
    ref2 = _reference(x2, t2)
    assert jnp.allclose(out2, ref2, atol=1e-5, rtol=1e-5), (out2, ref2)

    # Non-128-divisible pixel count + bf16 logits (kernel math stays f32).
    N3, C3, H3, W3 = 2, 5, 10, 10
    x3 = jax.random.normal(k5, (N3, C3, H3, W3), dtype=jnp.float32
                           ).astype(jnp.bfloat16)
    t3 = jax.random.randint(k6, (N3, H3, W3), 0, C3, dtype=jnp.int32)
    out3 = jax.block_until_ready(self_ce_loss(x3, t3))
    ref3 = _reference(x3, t3)
    assert jnp.allclose(out3, ref3, atol=1e-4, rtol=1e-4), (out3, ref3)

    print("KERNEL_OK")
</pallas_src>

<mosaic_0001>
module attributes {stable_mosaic.version = 11 : i64} {
  func.func @_selfce_kernel(%arg0: i32, %arg1: i32, %arg2: memref<1x4x8x128xf32, #tpu.memory_space<vmem>>, %arg3: memref<1x8x128xi32, #tpu.memory_space<vmem>>, %arg4: memref<1x1x1xf32, #tpu.memory_space<vmem>>, %arg5: memref<8x128xf32, #tpu.memory_space<vmem>>) attributes {dimension_semantics = [#tpu.dimension_semantics<parallel>, #tpu.dimension_semantics<arbitrary>], iteration_bounds = array<i64: 2, 1>, scalar_prefetch = 0 : i64, scratch_operands = 1 : i64, tpu.core_type = #tpu.core_type<tc>, window_params = [{transform_indices = @transform_0, window_bounds = array<i64: 1, 4, 8, 128>}, {transform_indices = @transform_1, window_bounds = array<i64: 1, 8, 128>}, {transform_indices = @transform_2, window_bounds = array<i64: 1, 1, 1>}]} {
    %c0_i32 = arith.constant 0 : i32
    %0 = arith.cmpi eq, %arg1, %c0_i32 : i32
    %1 = arith.extui %0 : i1 to i32
    %c0_i32_0 = arith.constant 0 : i32
    %2 = arith.cmpi ne, %1, %c0_i32_0 : i32
    scf.if %2 {
      %cst_42 = arith.constant 0.000000e+00 : f32
      %73 = vector.broadcast %cst_42 : f32 to vector<8x128xf32>
      %c0_43 = arith.constant 0 : index
      %c0_44 = arith.constant 0 : index
      %74 = vector.load %arg5[%c0_43, %c0_44] : memref<8x128xf32, #tpu.memory_space<vmem>>, vector<8x128xf32>
      tpu.vector_store %arg5[%c0_43, %c0_44], %73 {strides = array<i32>} : memref<8x128xf32, #tpu.memory_space<vmem>>, vector<8x128xf32>,
    } else {
    }
    %c0 = arith.constant 0 : index
    %c0_1 = arith.constant 0 : index
    %c0_2 = arith.constant 0 : index
    %3 = vector.load %arg3[%c0, %c0_1, %c0_2] : memref<1x8x128xi32, #tpu.memory_space<vmem>>, vector<1x8x128xi32>
    %4 = vector.shape_cast %3 : vector<1x8x128xi32> to vector<8x128xi32>
    %c0_3 = arith.constant 0 : index
    %c0_4 = arith.constant 0 : index
    %c0_5 = arith.constant 0 : index
    %c0_6 = arith.constant 0 : index
    %5 = vector.load %arg2[%c0_3, %c0_4, %c0_5, %c0_6] : memref<1x4x8x128xf32, #tpu.memory_space<vmem>>, vector<1x1x8x128xf32>
    %6 = vector.shape_cast %5 : vector<1x1x8x128xf32> to vector<8x128xf32>
    %c0_7 = arith.constant 0 : index
    %c1 = arith.constant 1 : index
    %c0_8 = arith.constant 0 : index
    %c0_9 = arith.constant 0 : index
    %7 = vector.load %arg2[%c0_7, %c1, %c0_8, %c0_9] : memref<1x4x8x128xf32, #tpu.memory_space<vmem>>, vector<1x1x8x128xf32>
    %8 = vector.shape_cast %7 : vector<1x1x8x128xf32> to vector<8x128xf32>
    %9 = arith.maximumf %6, %8 : vector<8x128xf32>
    %c0_10 = arith.constant 0 : index
    %c2 = arith.constant 2 : index
    %c0_11 = arith.constant 0 : index
    %c0_12 = arith.constant 0 : index
    %10 = vector.load %arg2[%c0_10, %c2, %c0_11, %c0_12] : memref<1x4x8x128xf32, #tpu.memory_space<vmem>>, vector<1x1x8x128xf32>
    %11 = vector.shape_cast %10 : vector<1x1x8x128xf32> to vector<8x128xf32>
    %12 = arith.maximumf %9, %11 : vector<8x128xf32>
    %c0_13 = arith.constant 0 : index
    %c3 = arith.constant 3 : index
    %c0_14 = arith.constant 0 : index
    %c0_15 = arith.constant 0 : index
    %13 = vector.load %arg2[%c0_13, %c3, %c0_14, %c0_15] : memref<1x4x8x128xf32, #tpu.memory_space<vmem>>, vector<1x1x8x128xf32>
    %14 = vector.shape_cast %13 : vector<1x1x8x128xf32> to vector<8x128xf32>
    %15 = arith.maximumf %12, %14 : vector<8x128xf32>
    %cst = arith.constant 0.000000e+00 : f32
    %16 = vector.broadcast %cst : f32 to vector<8x128xf32>
    %cst_16 = arith.constant 0.000000e+00 : f32
    %17 = vector.broadcast %cst_16 : f32 to vector<8x128xf32>
    %c0_17 = arith.constant 0 : index
    %c0_18 = arith.constant 0 : index
    %c0_19 = arith.constant 0 : index
    %c0_20 = arith.constant 0 : index
    %18 = vector.load %arg2[%c0_17, %c0_18, %c0_19, %c0_20] : memref<1x4x8x128xf32, #tpu.memory_space<vmem>>, vector<1x1x8x128xf32>
    %19 = vector.shape_cast %18 : vector<1x1x8x128xf32> to vector<8x128xf32>
    %20 = arith.subf %19, %15 : vector<8x128xf32>
    %21 = math.exp %20 : vector<8x128xf32>
    %22 = arith.addf %16, %21 : vector<8x128xf32>
    %c0_i32_21 = arith.constant 0 : i32
    %23 = vector.broadcast %c0_i32_21 : i32 to vector<8x128xi32>
    %24 = arith.cmpi eq, %4, %23 : vector<8x128xi32>
    %25 = arith.select %24, %19, %17 : vector<8x128xi1>, vector<8x128xf32>
    %c0_22 = arith.constant 0 : index
    %c1_23 = arith.constant 1 : index
    %c0_24 = arith.constant 0 : index
    %c0_25 = arith.constant 0 : index
    %26 = vector.load %arg2[%c0_22, %c1_23, %c0_24, %c0_25] : memref<1x4x8x128xf32, #tpu.memory_space<vmem>>, vector<1x1x8x128xf32>
    %27 = vector.shape_cast %26 : vector<1x1x8x128xf32> to vector<8x128xf32>
    %28 = arith.subf %27, %15 : vector<8x128xf32>
    %29 = math.exp %28 : vector<8x128xf32>
    %30 = arith.addf %22, %29 : vector<8x128xf32>
    %c1_i32 = arith.constant 1 : i32
    %31 = vector.broadcast %c1_i32 : i32 to vector<8x128xi32>
    %32 = arith.cmpi eq, %4, %31 : vector<8x128xi32>
    %33 = arith.select %32, %27, %25 : vector<8x128xi1>, vector<8x128xf32>
    %c0_26 = arith.constant 0 : index
    %c2_27 = arith.constant 2 : index
    %c0_28 = arith.constant 0 : index
    %c0_29 = arith.constant 0 : index
    %34 = vector.load %arg2[%c0_26, %c2_27, %c0_28, %c0_29] : memref<1x4x8x128xf32, #tpu.memory_space<vmem>>, vector<1x1x8x128xf32>
    %35 = vector.shape_cast %34 : vector<1x1x8x128xf32> to vector<8x128xf32>
    %36 = arith.subf %35, %15 : vector<8x128xf32>
    %37 = math.exp %36 : vector<8x128xf32>
    %38 = arith.addf %30, %37 : vector<8x128xf32>
    %c2_i32 = arith.constant 2 : i32
    %39 = vector.broadcast %c2_i32 : i32 to vector<8x128xi32>
    %40 = arith.cmpi eq, %4, %39 : vector<8x128xi32>
    %41 = arith.select %40, %35, %33 : vector<8x128xi1>, vector<8x128xf32>
    %c0_30 = arith.constant 0 : index
    %c3_31 = arith.constant 3 : index
    %c0_32 = arith.constant 0 : index
    %c0_33 = arith.constant 0 : index
    %42 = vector.load %arg2[%c0_30, %c3_31, %c0_32, %c0_33] : memref<1x4x8x128xf32, #tpu.memory_space<vmem>>, vector<1x1x8x128xf32>
    %43 = vector.shape_cast %42 : vector<1x1x8x128xf32> to vector<8x128xf32>
    %44 = arith.subf %43, %15 : vector<8x128xf32>
    %45 = math.exp %44 : vector<8x128xf32>
    %46 = arith.addf %38, %45 : vector<8x128xf32>
    %c3_i32 = arith.constant 3 : i32
    %47 = vector.broadcast %c3_i32 : i32 to vector<8x128xi32>
    %48 = arith.cmpi eq, %4, %47 : vector<8x128xi32>
    %49 = arith.select %48, %43, %41 : vector<8x128xi1>, vector<8x128xf32>
    %50 = math.log %46 : vector<8x128xf32>
    %51 = arith.addf %50, %15 : vector<8x128xf32>
    %52 = arith.subf %51, %49 : vector<8x128xf32>
    %53 = tpu.iota {dimensions = array<i32: 0>} : vector<8x128xi32>
    %54 = tpu.iota {dimensions = array<i32: 1>} : vector<8x128xi32>
    %c8_i32 = arith.constant 8 : i32
    %55 = arith.muli %arg1, %c8_i32 : i32
    %56 = vector.broadcast %55 : i32 to vector<8x128xi32>
    %57 = arith.addi %56, %53 : vector<8x128xi32>
    %c128_i32 = arith.constant 128 : i32
    %58 = vector.broadcast %c128_i32 : i32 to vector<8x128xi32>
    %59 = arith.muli %57, %58 : vector<8x128xi32>
    %60 = arith.addi %59, %54 : vector<8x128xi32>
    %c256_i32 = arith.constant 256 : i32
    %61 = vector.broadcast %c256_i32 : i32 to vector<8x128xi32>
    %62 = arith.cmpi slt, %60, %61 : vector<8x128xi32>
    %cst_34 = arith.constant 0.000000e+00 : f32
    %63 = vector.broadcast %cst_34 : f32 to vector<8x128xf32>
    %64 = arith.select %62, %52, %63 : vector<8x128xi1>, vector<8x128xf32>
    %c0_35 = arith.constant 0 : index
    %c0_36 = arith.constant 0 : index
    %65 = vector.load %arg5[%c0_35, %c0_36] : memref<8x128xf32, #tpu.memory_space<vmem>>, vector<8x128xf32>
    %66 = vector.shape_cast %64 : vector<8x128xf32> to vector<1x8x128xf32>
    %cst_37 = arith.constant dense<0.000000e+00> : vector<8x128xf32>
    %67 = vector.multi_reduction <add>, %66, %cst_37 [0] : vector<1x8x128xf32> to vector<8x128xf32>
    %68 = arith.addf %65, %67 : vector<8x128xf32>
    %c0_38 = arith.constant 0 : index
    %c0_39 = arith.constant 0 : index
    %69 = vector.load %arg5[%c0_38, %c0_39] : memref<8x128xf32, #tpu.memory_space<vmem>>, vector<8x128xf32>
    tpu.vector_store %arg5[%c0_38, %c0_39], %68 {strides = array<i32>} : memref<8x128xf32, #tpu.memory_space<vmem>>, vector<8x128xf32>,
    %c0_i32_40 = arith.constant 0 : i32
    %70 = arith.cmpi eq, %arg1, %c0_i32_40 : i32
    %71 = arith.extui %70 : i1 to i32
    %c0_i32_41 = arith.constant 0 : i32
    %72 = arith.cmpi ne, %71, %c0_i32_41 : i32
    scf.if %72 {
      %c0_42 = arith.constant 0 : index
      %c0_43 = arith.constant 0 : index
      %73 = vector.load %arg5[%c0_42, %c0_43] : memref<8x128xf32, #tpu.memory_space<vmem>>, vector<8x128xf32>
      %74 = vector.shape_cast %73 : vector<8x128xf32> to vector<1x8x128xf32>
      %cst_44 = arith.constant dense<0.000000e+00> : vector<1xf32>
      %75 = vector.multi_reduction <add>, %74, %cst_44 [1, 2] : vector<1x8x128xf32> to vector<1xf32>
      %76 = vector.shape_cast %75 : vector<1xf32> to vector<1x1x1xf32>
      %77 = vector.extract %76[0, 0, 0] : f32 from vector<1x1x1xf32>
      %78 = vector.broadcast %77 : f32 to vector<1x1xf32>
      %cst_45 = arith.constant 3.906250e-03 : f32
      %79 = vector.broadcast %cst_45 : f32 to vector<1x1xf32>
      %80 = arith.mulf %78, %79 : vector<1x1xf32>
      %81 = vector.shape_cast %80 : vector<1x1xf32> to vector<1x1x1xf32>
      %c0_46 = arith.constant 0 : index
      %c0_47 = arith.constant 0 : index
      %c0_48 = arith.constant 0 : index
      %82 = vector.load %arg4[%c0_46, %c0_47, %c0_48] : memref<1x1x1xf32, #tpu.memory_space<vmem>>, vector<1x1x1xf32>
      tpu.vector_store %arg4[%c0_46, %c0_47, %c0_48], %81 {strides = array<i32>} : memref<1x1x1xf32, #tpu.memory_space<vmem>>, vector<1x1x1xf32>,
    } else {
    }
    return
  }
  func.func @transform_0(%arg0: i32, %arg1: i32) -> (i32, i32, i32, i32) {
    %c0_i32 = arith.constant 0 : i32
    %c0_i32_0 = arith.constant 0 : i32
    %c0_i32_1 = arith.constant 0 : i32
    return %arg0, %c0_i32, %arg1, %c0_i32_0 : i32, i32, i32, i32
  }
  func.func @transform_1(%arg0: i32, %arg1: i32) -> (i32, i32, i32) {
    %c0_i32 = arith.constant 0 : i32
    %c0_i32_0 = arith.constant 0 : i32
    return %arg0, %arg1, %c0_i32 : i32, i32, i32
  }
  func.func @transform_2(%arg0: i32, %arg1: i32) -> (i32, i32, i32) {
    %c0_i32 = arith.constant 0 : i32
    %c0_i32_0 = arith.constant 0 : i32
    %c0_i32_1 = arith.constant 0 : i32
    return %arg0, %c0_i32, %c0_i32_0 : i32, i32, i32
  }
}

</mosaic_0001>

<llo_original>
// kernel: tpu_custom_call.1
$region0: #{tpu_custom_call.1}
  #allocation0 [shape = 'u32[]', space=smem, size = 0x4, offset = 0x4, fixed_abs, tag = 'smem constant byte address 0x4 - core index']
  #allocation1 [shape = 'u32[144,128]{1,0:T(1,128)}', space=vmem, size = 0x12000, scoped, tag = 'internal scratch']
  #allocation2 [shape = 'f32[8,128]{1,0:T(8,128)}', space=vmem, size = 0x1000, scoped, tag = 'scratch operand']
  %s0 = inlined_call_operand.hbm [shape: f32[2,4,8,128], index: 0, kind: input, shape index: {}]
  %s1 = inlined_call_operand.hbm [shape: s32[2,8,128], index: 1, kind: input, shape index: {}]
  %s2 = inlined_call_operand.vmem [shape: f32[2,1,1], index: 2, kind: output, shape index: {}]
  %s3 = sld [smem:[#allocation0]]
  $region57: #{tpu_custom_call.1} parent=0
    _
  %s5 = ssub.s32 1, %s3
  %s6 = scalar_select 0, %s5, %s3
  $region1: #{tpu_custom_call.1} parent=0
    #allocation3 [shape = 'u8[32768]{0}', space=vmem, size = 0x8000, scoped, tag = 'input window, operand 0']
    #allocation4 [shape = 's32[2]{0}', space=sflag, size = 0x8, scoped, tag = 'scoped memory for tpu_custom_call.1']
    #allocation5 [shape = 'u8[8192]{0}', space=vmem, size = 0x2000, scoped, tag = 'input window, operand 1']
    #allocation6 [shape = 's32[2]{0}', space=sflag, size = 0x8, scoped, tag = 'scoped memory for tpu_custom_call.1']
    %7 = vsyncpa [#allocation4], 0
    %s8 = scalar_lea.sflag [#allocation4], 1
    %9 = vsyncpa %s8, 0
    %10 = vsyncpa [#allocation6], 0
    %s11 = scalar_lea.sflag [#allocation6], 1
    %12 = vsyncpa %s11, 0
    loop: start=0, step=1, limit=4
    $region2: #{tpu_custom_call.1} parent=1 // loop_pre_header
      _
    $region3: #{tpu_custom_call.1} parent=1 // loop_header
      %s14 = sphi 0, %s18
      %p15 = scmp.ge.s32.totalorder %s14, 4
      %s21 = sphi 0, %s33
      %s22 = sphi 0, %s29
      %s23 = sphi 0, %s21
      %s24 = sphi 0, %s22
      %s25 = sphi 0, %s23
      %s26 = sphi 0, %s24
      %s38 = sphi 0, %s40
      %s41 = sphi 0, %s38
      %s42 = sphi 0, %s41
      %s58 = sphi 0, %s42
      %s66 = sphi 0, %s68
      %s69 = sphi 0, %s66
      %s70 = sphi 0, %s69
      %s86 = sphi 0, %s70
      %s92 = sphi 0, %s94
      %s95 = sphi 0, %s92
      %s96 = sphi 0, %s95
      %s112 = sphi 0, %s96
    $region4: #{tpu_custom_call.1} parent=1 // loop_header_branch
      %17 = sbr.rel (%p15) target = $region8
    $region5: #{tpu_custom_call.1} parent=1 // loop_body
      %s19 = ssub.s32 %s14, 1
      %s20 = ssub.s32 %s14, 2
      %s27 = sadd.s32 1, %s22
      %p28 = scmp.ge.s32.totalorder %s27, 1
      %s29 = scalar_select %p28, 0, %s27
      %s30 = sadd.s32 1, %s21
      %s31 = scalar_select %p28, %s30, %s21
      %p32 = scmp.ge.s32.totalorder %s31, 2
      %s33 = scalar_select %p32, 0, %s31
      %s34 = ssub.s32 %s21, %s33
      %s35 = ssub.s32 %s22, %s29
      %s36 = sor.u32 %s34, %s35
      %p37 = scmp.eq.s32.totalorder %s36, 0
      %s39 = sadd.s32 %s38, 1
      %s40 = scalar_select %p37, %s38, %s39
      %p43 = pneg %p37
      %p44 = scmp.eq.s32.totalorder %s14, 1
      %p45 = por %p43, %p44
      %p46 = scmp.ne.s32.totalorder %s38, %s41
      %p47 = scmp.eq.s32.totalorder %s14, 0
      %p48 = por %p46, %p47
      %p49 = scmp.ne.s32.totalorder %s38, %s41
      %p50 = scmp.eq.s32.totalorder %s19, 1
      %p51 = por %p49, %p50
      %p52 = scmp.ne.s32.totalorder %s41, %s42
      %p53 = scmp.eq.s32.totalorder %s19, 0
      %p54 = por %p52, %p53
      %p55 = scmp.ne.s32.totalorder %s41, %s42
      %p56 = scmp.eq.s32.totalorder %s20, 1
      %p57 = por %p55, %p56
      %p59 = scmp.ne.s32.totalorder %s42, %s58
      %p60 = scmp.eq.s32.totalorder %s20, 0
      %p61 = por %p59, %p60
      %s62 = ssub.s32 %s21, %s33
      %s63 = ssub.s32 %s22, %s29
      %s64 = sor.u32 %s62, %s63
      %p65 = scmp.eq.s32.totalorder %s64, 0
      %s67 = sadd.s32 %s66, 1
      %s68 = scalar_select %p65, %s66, %s67
      %p71 = pneg %p65
      %p72 = scmp.eq.s32.totalorder %s14, 1
      %p73 = por %p71, %p72
      %p74 = scmp.ne.s32.totalorder %s66, %s69
      %p75 = scmp.eq.s32.totalorder %s14, 0
      %p76 = por %p74, %p75
      %p77 = scmp.ne.s32.totalorder %s66, %s69
      %p78 = scmp.eq.s32.totalorder %s19, 1
      %p79 = por %p77, %p78
      %p80 = scmp.ne.s32.totalorder %s69, %s70
      %p81 = scmp.eq.s32.totalorder %s19, 0
      %p82 = por %p80, %p81
      %p83 = scmp.ne.s32.totalorder %s69, %s70
      %p84 = scmp.eq.s32.totalorder %s20, 1
      %p85 = por %p83, %p84
      %p87 = scmp.ne.s32.totalorder %s70, %s86
      %p88 = scmp.eq.s32.totalorder %s20, 0
      %p89 = por %p87, %p88
      %s90 = ssub.s32 %s21, %s33
      %p91 = scmp.eq.s32.totalorder %s90, 0
      %s93 = sadd.s32 %s92, 1
      %s94 = scalar_select %p91, %s92, %s93
      %p97 = pneg %p91
      %p98 = scmp.eq.s32.totalorder %s14, 1
      %p99 = por %p97, %p98
      %p100 = scmp.ne.s32.totalorder %s92, %s95
      %p101 = scmp.eq.s32.totalorder %s14, 0
      %p102 = por %p100, %p101
      %p103 = scmp.ne.s32.totalorder %s92, %s95
      %p104 = scmp.eq.s32.totalorder %s19, 1
      %p105 = por %p103, %p104
      %p106 = scmp.ne.s32.totalorder %s95, %s96
      %p107 = scmp.eq.s32.totalorder %s19, 0
      %p108 = por %p106, %p107
      %p109 = scmp.ne.s32.totalorder %s95, %s96
      %p110 = scmp.eq.s32.totalorder %s20, 1
      %p111 = por %p109, %p110
      %p113 = scmp.ne.s32.totalorder %s96, %s112
      %p114 = scmp.eq.s32.totalorder %s20, 0
      %p115 = por %p113, %p114
      %p116 = scmp.le.s32.totalorder 1, %s14
      %p117 = scmp.lt.s32.totalorder %s14, 3
      %p118 = pnand %p116, %p117
      %p119 = pneg %p118
      // Predicated region
      $region9: #{tpu_custom_call.1} parent=5 // pred_check
        _
      $region10: #{tpu_custom_call.1} parent=5 // pred_check_branch
        %121 = sbr.rel (%p118) target = $region12
      $region11: #{tpu_custom_call.1} parent=5 // pred_region
        %s122 = ssub.s32 %s14, 1
      $region12: #{tpu_custom_call.1} parent=5 // pred_fallthru
        _
      %p123 = scmp.lt.s32.totalorder %s14, 2
      // Predicated region
      $region13: #{tpu_custom_call.1} parent=5 // pred_check
        %p124 = pneg %p123
      $region14: #{tpu_custom_call.1} parent=5 // pred_check_branch
        %126 = sbr.rel (%p124) target = $region16
      $region15: #{tpu_custom_call.1} parent=5 // pred_region
        // Predicated region
        $region17: #{tpu_custom_call.1} parent=15 // pred_check
          %p127 = pneg %p48
        $region18: #{tpu_custom_call.1} parent=15 // pred_check_branch
          %129 = sbr.rel (%p127) target = $region20
        $region19: #{tpu_custom_call.1} parent=15 // pred_region
          %s130 = sand.u32 %s38, 1
          %s131 = scalar_lea.sflag [#allocation4], %s130
          %s132 = sand.u32 %s38, 1
          %s133 = smul.addr %s132, 32
          %s134 = scalar_lea.vmem [#allocation3], %s133
          %s136 = ssub.s32 512, 512
          %137 = vsyncadd %s131, %s136
          %s138 = smul.addr %s21, 4
          %s139 = sadd.s32 %s22, %s138
          %s140 = smul.addr %s139, 128
          %s141 = scalar_lea.hbm %s0, %s140
          %s142 = sshll.u32 %s134, 4
          %s143 = int_to_ptr.vmem [resolvable:$true] %s142
          %148 = dma.hbm_to_vmem [thread:$0]  %s141, 512, %s143, %s131, 128, 128, 8
        $region20: #{tpu_custom_call.1} parent=15 // pred_fallthru
          _
        // Predicated region
        $region21: #{tpu_custom_call.1} parent=15 // pred_check
          %p149 = pneg %p76
        $region22: #{tpu_custom_call.1} parent=15 // pred_check_branch
          %151 = sbr.rel (%p149) target = $region24
        $region23: #{tpu_custom_call.1} parent=15 // pred_region
          %s152 = sand.u32 %s66, 1
          %s153 = scalar_lea.sflag [#allocation6], %s152
          %s154 = sand.u32 %s66, 1
          %s155 = smul.addr %s154, 8
          %s156 = scalar_lea.vmem [#allocation5], %s155
          %s158 = ssub.s32 128, 128
          %159 = vsyncadd %s153, %s158
          %s160 = sadd.s32 %s22, %s21
          %s161 = smul.addr %s160, 128
          %s162 = scalar_lea.hbm %s1, %s161
          %s164 = sshll.u32 %s156, 4
          %s165 = int_to_ptr.vmem [resolvable:$true] %s164
          %167 = dma.hbm_to_vmem [thread:$0]  %s162, 128, %s165, %s153
        $region24: #{tpu_custom_call.1} parent=15 // pred_fallthru
          _
      $region16: #{tpu_custom_call.1} parent=5 // pred_fallthru
        _
      %p168 = scmp.le.s32.totalorder 1, %s14
      %p169 = scmp.lt.s32.totalorder %s14, 3
      %p170 = pnand %p168, %p169
      %p171 = pneg %p170
      // Predicated region
      $region25: #{tpu_custom_call.1} parent=5 // pred_check
        _
      $region26: #{tpu_custom_call.1} parent=5 // pred_check_branch
        %173 = sbr.rel (%p170) target = $region28
      $region27: #{tpu_custom_call.1} parent=5 // pred_region
        %s174 = ssub.s32 %s14, 1
        %s175 = sand.u32 %s41, 1
        %s176 = scalar_lea.sflag [#allocation4], %s175
        %s177 = sand.u32 %s41, 1
        %s178 = smul.addr %s177, 32
        %s179 = scalar_lea.vmem [#allocation3], %s178
        // Predicated region
        $region29: #{tpu_custom_call.1} parent=27 // pred_check
          %p180 = pneg %p54
        $region30: #{tpu_custom_call.1} parent=27 // pred_check_branch
          %182 = sbr.rel (%p180) target = $region32
        $region31: #{tpu_custom_call.1} parent=27 // pred_region
          %183 = dma.done %s176, 512
        $region32: #{tpu_custom_call.1} parent=27 // pred_fallthru
          _
        %s184 = sand.u32 %s69, 1
        %s185 = scalar_lea.sflag [#allocation6], %s184
        %s186 = sand.u32 %s69, 1
        %s187 = smul.addr %s186, 8
        %s188 = scalar_lea.vmem [#allocation5], %s187
        // Predicated region
        $region33: #{tpu_custom_call.1} parent=27 // pred_check
          %p189 = pneg %p82
        $region34: #{tpu_custom_call.1} parent=27 // pred_check_branch
          %191 = sbr.rel (%p189) target = $region36
        $region35: #{tpu_custom_call.1} parent=27 // pred_region
          %192 = dma.done %s185, 128
        $region36: #{tpu_custom_call.1} parent=27 // pred_fallthru
          _
        %s193 = sand.u32 %s41, 1
        %s194 = scalar_lea.sflag [#allocation4], %s193
        %s195 = sand.u32 %s41, 1
        %s196 = smul.addr %s195, 32
        %s197 = scalar_lea.vmem [#allocation3], %s196
        %p198 = pneg %p54
        %p199 = pneg %p51
        %s200 = sand.u32 %s69, 1
        %s201 = scalar_lea.sflag [#allocation6], %s200
        %s202 = sand.u32 %s69, 1
        %s203 = smul.addr %s202, 8
        %s204 = scalar_lea.vmem [#allocation5], %s203
        %p205 = pneg %p82
        %p206 = pneg %p79
        %p207 = pneg %p108
        %p208 = pneg %p105
        %p209 = scmp.lt.s32.totalorder %s23, 1
        %s210 = scalar_select %p209, %s23, 1
        %s211 = scalar_lea.vmem %s2, %s210
        %p212 = scmp.lt.s32.totalorder %s23, 1
        %s213 = scalar_select %p212, %s23, 1
        %s214 = scalar_lea.vmem %s2, %s213
        %p215 = scmp.eq.s32.totalorder %s24, 0
        // Predicated region
        $region37: #{tpu_custom_call.1} parent=27 // pred_check
          %p216 = pneg %p215
        $region38: #{tpu_custom_call.1} parent=27 // pred_check_branch
          %218 = sbr.rel (%p216) target = $region40
        $region39: #{tpu_custom_call.1} parent=27 // pred_region
          %219 = vst [vmem:[#allocation2] sm:$0xff] 0.0
        $region40: #{tpu_custom_call.1} parent=27 // pred_fallthru
          _
        %v220 = vld [vmem:[%s188] sm:$0xff]
        %v221 = vld [vmem:[%s179] sm:$0xff]
        %s222 = scalar_lea.vmem %s179, 8 [#allocation3]
        %v223 = vld [vmem:[%s222] sm:$0xff]
        %v224 = vmax.f32 %v221, %v223
        %s225 = scalar_lea.vmem %s179, 16 [#allocation3]
        %v226 = vld [vmem:[%s225] sm:$0xff]
        %v227 = vmax.f32 %v224, %v226
        %s228 = scalar_lea.vmem %s179, 24 [#allocation3]
        %v229 = vld [vmem:[%s228] sm:$0xff]
        %v230 = vmax.f32 %v227, %v229
        %v231 = vsub.f32 %v221, %v230
        %v232 = vmul.f32 %v231, 1.442695
        %v233 = vpow.pop %v232
        %v234 = vadd.f32 %v233, 0.0
        %vm235 = vcmp.eq.s32.totalorder %v220, 0
        %v236 = vsel %vm235, %v221, 0.0
        %v237 = vsub.f32 %v223, %v230
        %v238 = vmul.f32 %v237, 1.442695
        %v239 = vpow.pop %v238
        %v240 = vadd.f32 %v234, %v239
        %vm241 = vcmp.eq.s32.totalorder %v220, 1
        %v242 = vsel %vm241, %v223, %v236
        %v243 = vsub.f32 %v226, %v230
        %v244 = vmul.f32 %v243, 1.442695
        %v245 = vpow.pop %v244
        %v246 = vadd.f32 %v240, %v245
        %vm247 = vcmp.eq.s32.totalorder %v220, 2
        %v248 = vsel %vm247, %v226, %v242
        %v249 = vsub.f32 %v229, %v230
        %v250 = vmul.f32 %v249, 1.442695
        %v251 = vpow.pop %v250
        %v252 = vadd.f32 %v246, %v251
        %vm253 = vcmp.eq.s32.totalorder %v220, 3
        %v254 = vsel %vm253, %v229, %v248
        %v255 = vlog2.pop %v252
        %v256 = vmul.f32 %v255, 0.6931472
        %v257 = vadd.f32 %v256, %v230
        %v258 = vsub.f32 %v257, %v254
        %v259 = vlaneseq
        %v260 = vshrl.u32 %v259, 7
        %v261 = vlaneseq
        %v262 = vand.u32 %v261, 127
        %s263 = smul.u32 %s24, 8
        %v264 = vstv %s263
        %v265 = vadd.s32 %v264, %v260
        %v266 = vmul.u32 %v265, 128
        %v267 = vadd.s32 %v266, %v262
        %vm268 = vcmp.lt.s32.totalorder %v267, 256
        %v269 = vsel %vm268, %v258, 0.0
        %v270 = vld [vmem:[#allocation2] sm:$0xff]
        %v271 = vadd.f32 %v269, 0.0
        %v272 = vadd.f32 %v270, %v271
        %273 = vst [vmem:[#allocation2] sm:$0xff] %v272
        // Predicated region
        $region41: #{tpu_custom_call.1} parent=27 // pred_check
          %p274 = pneg %p215
        $region42: #{tpu_custom_call.1} parent=27 // pred_check_branch
          %276 = sbr.rel (%p274) target = $region44
        $region43: #{tpu_custom_call.1} parent=27 // pred_region
          %v277 = vld [vmem:[#allocation2] sm:$0xff]
          %278 = vadd.xlane.f32.xlu0 %v277
          %v279 = vpop.xlane.xlu0 %278
          %v280 = vrot.slane %v279, 4
          %v281 = vadd.f32 %v279, %v280
          %v282 = vrot.slane %v281, 2
          %v283 = vadd.f32 %v281, %v282
          %v284 = vrot.slane %v283, 1
          %v285 = vadd.f32 %v283, %v284
          %s286 = vtos %v285
          %v287 = vstv %s286
          %v288 = vmul.f32 %v287, 0.00390625
          %vm289 = vcmask 0
          %290 = vst.msk [vmem:[%s214] sm:$0x1] %vm289, %v288
        $region44: #{tpu_custom_call.1} parent=27 // pred_fallthru
          _
        %p291 = scmp.lt.s32.totalorder %s23, 1
        %s292 = scalar_select %p291, %s23, 1
        %s293 = scalar_lea.vmem %s2, %s292
        // Predicated region
        $region45: #{tpu_custom_call.1} parent=27 // pred_check
          %p294 = pneg %p105
        $region46: #{tpu_custom_call.1} parent=27 // pred_check_branch
          %296 = sbr.rel (%p294) target = $region48
        $region47: #{tpu_custom_call.1} parent=27 // pred_region
          _
        $region48: #{tpu_custom_call.1} parent=27 // pred_fallthru
          _
      $region28: #{tpu_custom_call.1} parent=5 // pred_fallthru
        _
      %p297 = scmp.le.s32.totalorder 2, %s14
      // Predicated region
      $region49: #{tpu_custom_call.1} parent=5 // pred_check
        %p298 = pneg %p297
      $region50: #{tpu_custom_call.1} parent=5 // pred_check_branch
        %300 = sbr.rel (%p298) target = $region52
      $region51: #{tpu_custom_call.1} parent=5 // pred_region
        %s301 = ssub.s32 %s14, 2
        // Predicated region
        $region53: #{tpu_custom_call.1} parent=51 // pred_check
          %p302 = pneg %p111
        $region54: #{tpu_custom_call.1} parent=51 // pred_check_branch
          %304 = sbr.rel (%p302) target = $region56
        $region55: #{tpu_custom_call.1} parent=51 // pred_region
          %p305 = scmp.lt.s32.totalorder %s25, 1
          %s306 = scalar_select %p305, %s25, 1
          %s307 = scalar_lea.vmem %s2, %s306
        $region56: #{tpu_custom_call.1} parent=51 // pred_fallthru
          _
      $region52: #{tpu_custom_call.1} parent=5 // pred_fallthru
        _
    $region6: #{tpu_custom_call.1} parent=1 // loop_footer
      %s18 = sadd.s32 1, %s14
    $region7: #{tpu_custom_call.1} parent=1 // loop_footer_branch
      %13 = sbr.rel target = $region3
    $region8: #{tpu_custom_call.1} parent=1 // loop_exit
      _
    %308 = vsyncpa [#allocation4], 1
    %s309 = scalar_lea.sflag [#allocation4], 1
    %310 = vsyncpa %s309, 1
    %311 = vsyncpa [#allocation6], 1
    %s312 = scalar_lea.sflag [#allocation6], 1
    %313 = vsyncpa %s312, 1

</llo_original>
